<compile_context>
chip_gen: v7x
topology: tpu7x:2x2x1
jax: 0.10.0
libtpu: 0.0.40
codegen_flags: <defaults>
</compile_context>

<pallas_src>
import functools

import jax
import jax.numpy as jnp
from jax import lax
from jax.experimental import pallas as pl
from jax.experimental.pallas import tpu as pltpu


def _round_up(x, m):
    return (x + m - 1) // m * m


def _tpu_generation_params():
    """(narrow_mxu, vmem_limit_bytes, target_m_pixels) for the current chip."""
    kind = ""
    try:
        kind = jax.devices()[0].device_kind.lower()
    except Exception:
        pass
    # v2-v5 have 128-wide MXUs; v6e / v7x (and unknown/future) are 256-wide.
    narrow_mxu = any(t in kind for t in ("v2", "v3", "v4", "v5"))
    vmem_cap = None
    try:
        vmem_cap = getattr(pltpu.get_tpu_info(), "vmem_capacity_bytes", None)
    except Exception:
        vmem_cap = None
    if not vmem_cap or vmem_cap <= 0:
        # Conservative default (v7x-sized) if the query is unavailable.
        vmem_cap = 128 * 1024 * 1024 if narrow_mxu else 64 * 1024 * 1024
    vmem_limit = max(32 * 1024 * 1024, min(int(vmem_cap * 0.75), 100 * 1024 * 1024))
    target_m = 1024 if narrow_mxu else 512   # output pixels per tile (matmul M)
    return narrow_mxu, vmem_limit, target_m


def _pick_row_tile(oh, owp, target_m):
    """Rows per output tile.  OH gets padded up to a multiple of this, so no
    divisibility requirement and no toh=1 degenerate case for prime OH."""
    return max(1, min(oh, max(1, target_m // owp)))


# --------------------------------------------------------------------------- #
# Kernel A: im2col path (small Cin and/or strided convs).
# One lane-dense matmul per (row tile, Cout tile), fused BN + LeakyReLU.
# --------------------------------------------------------------------------- #
def _matmul_bn_leaky_kernel(x_ref, w_ref, scale_ref, shift_ref, o_ref,
                            *, toh, owp, cin_p, ct, negative_slope):
    # x_ref: (toh, owp, cin_p) bf16   w_ref: (cin_p, ct) bf16
    # scale/shift: (1, ct) f32        o_ref: (toh, owp, ct) f32
    xm = x_ref[...].reshape(toh * owp, cin_p)          # owp % 16 == 0 -> aligned
    acc = jnp.dot(xm, w_ref[...], preferred_element_type=jnp.float32)
    y = acc * scale_ref[...] + shift_ref[...]
    y = jnp.where(y > 0, y, negative_slope * y)
    o_ref[...] = y.reshape(toh, owp, ct).astype(o_ref.dtype)


# --------------------------------------------------------------------------- #
# Kernel B: tap-loop path (large Cin, stride 1).
# Image stays in HBM; a row slab (with halo) is DMA'd into VMEM scratch once per
# row tile (co == 0) and reused across all Cout tiles.
# --------------------------------------------------------------------------- #
def _conv_tap_bn_leaky_kernel(x_hbm, w_ref, scale_ref, shift_ref, o_ref,
                              xbuf, sem,
                              *, ksize, toh, owp, cin_p, ct, slab_rows, hp2,
                              negative_slope):
    b = pl.program_id(0)
    rt = pl.program_id(1)
    co = pl.program_id(2)

    @pl.when(co == 0)
    def _fetch_slab():
        # x_hbm is flattened to (N*HP2, WP, Cin_p); slab never crosses an image.
        row0 = b * hp2 + rt * toh
        cp = pltpu.make_async_copy(x_hbm.at[pl.ds(row0, slab_rows)], xbuf, sem)
        cp.start()
        cp.wait()
        # TODO(synk): overlap this slab DMA with the tail of the previous row
        # tile via a second buffer once profiles show it exposed.

    acc = jnp.zeros((toh * owp, ct), dtype=jnp.float32)
    for kh in range(ksize):
        for kw in range(ksize):
            xk = xbuf[pl.ds(kh, toh), pl.ds(kw, owp), :]      # (toh, owp, cin_p)
            acc = acc + jnp.dot(xk.reshape(toh * owp, cin_p), w_ref[kh, kw],
                                preferred_element_type=jnp.float32)
            # TODO(synk): replace the kw=1,2 sublane-misaligned slices with a
            # pltpu.roll along W (XLU slot) if profiles show ld/st pressure.

    y = acc * scale_ref[...] + shift_ref[...]
    y = jnp.where(y > 0, y, negative_slope * y)
    o_ref[...] = y.reshape(toh, owp, ct).astype(o_ref.dtype)


# --------------------------------------------------------------------------- #
# Wrapper
# --------------------------------------------------------------------------- #
def convolutional_forward(x_nchw, conv_w, bn_weight, bn_bias,
                          running_mean, running_var,
                          *, stride=1, pad=1, eps=1e-5, negative_slope=0.1):
    """x_nchw: (N, Cin, H, W) float32.  conv_w: (Cout, Cin, KH, KW)."""
    n, cin, h, w = x_nchw.shape
    cout, cin_w, kh_, kw_ = conv_w.shape
    assert cin_w == cin and kh_ == kw_
    k = kh_
    oh = (h + 2 * pad - k) // stride + 1
    ow = (w + 2 * pad - k) // stride + 1

    narrow_mxu, vmem_limit, target_m = _tpu_generation_params()
    ct = 256 if (not narrow_mxu and cout > 128) else 128     # Cout tile (MXU N)
    cout_p = _round_up(cout, ct)
    n_co = cout_p // ct
    owp = _round_up(ow, 16)                                  # bf16 sublane pack

    # ---- glue (plain JAX): layout, padding, BN folding, bf16 cast ----
    # TODO(synk): in a full network keep activations NHWC/bf16 across layers so
    # these boundary transposes/pads happen once, not per layer.
    scale = (bn_weight / jnp.sqrt(running_var + eps)).astype(jnp.float32)
    shift = (bn_bias - running_mean * scale).astype(jnp.float32)
    scale_p = jnp.pad(scale, (0, cout_p - cout)).reshape(1, cout_p)
    shift_p = jnp.pad(shift, (0, cout_p - cout)).reshape(1, cout_p)

    x_nhwc = jnp.transpose(x_nchw, (0, 2, 3, 1))             # (N,H,W,Cin)
    w_hwio = jnp.transpose(conv_w, (2, 3, 1, 0))             # (KH,KW,Cin,Cout)

    # Small-Cin layers and all strided layers go through im2col (dense K, one
    # matmul per tile, no halo).  Large-Cin stride-1 layers keep the tap loop.
    use_im2col = (k * k * cin <= 256) or (stride > 1)

    if use_im2col:
        keff = k * k * cin
        cin_p = _round_up(keff, 128)

        x_sp = jnp.pad(x_nhwc, ((0, 0), (pad, pad), (pad, pad), (0, 0)))
        cols = []
        for dh in range(k):
            for dw in range(k):
                cols.append(x_sp[:, dh:dh + (oh - 1) * stride + 1:stride,
                                 dw:dw + (ow - 1) * stride + 1:stride, :])
        x_col = jnp.concatenate(cols, axis=-1) if len(cols) > 1 else cols[0]

        toh = _pick_row_tile(oh, owp, target_m)
        def _est_a(t):
            return (2 * t * owp * cin_p * 2 + 2 * cin_p * ct * 2
                    + 2 * t * owp * ct * 4)
        while toh > 1 and _est_a(toh) > int(0.6 * vmem_limit):
            toh = max(1, toh // 2)
        oh_pad = _round_up(oh, toh)
        n_rt = oh_pad // toh

        x_col = jnp.pad(x_col, ((0, 0), (0, oh_pad - oh), (0, owp - ow),
                                (0, cin_p - keff))).astype(jnp.bfloat16)
        w_col = w_hwio.reshape(keff, cout)
        w_col = jnp.pad(w_col, ((0, cin_p - keff),
                                (0, cout_p - cout))).astype(jnp.bfloat16)

        kernel = functools.partial(_matmul_bn_leaky_kernel,
                                   toh=toh, owp=owp, cin_p=cin_p, ct=ct,
                                   negative_slope=negative_slope)
        out = pl.pallas_call(
            kernel,
            out_shape=jax.ShapeDtypeStruct((n, oh_pad, owp, cout_p), jnp.float32),
            grid_spec=pltpu.PrefetchScalarGridSpec(
                num_scalar_prefetch=0,
                grid=(n, n_rt, n_co),
                in_specs=[
                    # Row tile of the im2col'd image: resident across co.
                    pl.BlockSpec((None, toh, owp, cin_p),
                                 lambda b, rt, co: (b, rt, 0, 0)),
                    pl.BlockSpec((cin_p, ct), lambda b, rt, co: (0, co)),
                    pl.BlockSpec((1, ct), lambda b, rt, co: (0, co)),
                    pl.BlockSpec((1, ct), lambda b, rt, co: (0, co)),
                ],
                out_specs=pl.BlockSpec((None, toh, owp, ct),
                                       lambda b, rt, co: (b, rt, 0, co)),
            ),
            compiler_params=pltpu.CompilerParams(
                dimension_semantics=("parallel", "parallel", "parallel"),
                vmem_limit_bytes=vmem_limit),
        )(x_col, w_col, scale_p, shift_p)

    else:
        if stride != 1:
            # stride>1 with very large Cin would take this path; routed to
            # im2col above instead, so this never triggers.
            raise NotImplementedError("stride>1 handled via the im2col path")
        cin_p = _round_up(cin, 128)
        toh = _pick_row_tile(oh, owp, target_m)
        wp_in = _round_up(owp + k - 1, 8)
        def _est_b(t):
            return ((t + k - 1) * wp_in * cin_p * 2
                    + 2 * k * k * cin_p * ct * 2 + 2 * t * owp * ct * 4)
        while toh > 1 and _est_b(toh) > int(0.6 * vmem_limit):
            toh = max(1, toh // 2)
        slab_rows = toh + k - 1
        oh_pad = _round_up(oh, toh)
        n_rt = oh_pad // toh
        hp2 = oh_pad + k - 1

        x_pad = jnp.pad(x_nhwc, ((0, 0), (pad, hp2 - h - pad),
                                 (pad, wp_in - w - pad), (0, cin_p - cin)))
        x_pad = x_pad.astype(jnp.bfloat16).reshape(n * hp2, wp_in, cin_p)
        w_p = jnp.pad(w_hwio, ((0, 0), (0, 0), (0, cin_p - cin),
                               (0, cout_p - cout))).astype(jnp.bfloat16)

        kernel = functools.partial(_conv_tap_bn_leaky_kernel,
                                   ksize=k, toh=toh, owp=owp, cin_p=cin_p,
                                   ct=ct, slab_rows=slab_rows, hp2=hp2,
                                   negative_slope=negative_slope)
        out = pl.pallas_call(
            kernel,
            out_shape=jax.ShapeDtypeStruct((n, oh_pad, owp, cout_p), jnp.float32),
            grid_spec=pltpu.PrefetchScalarGridSpec(
                num_scalar_prefetch=0,
                grid=(n, n_rt, n_co),
                in_specs=[
                    # Image stays in HBM; row slabs are DMA'd manually.
                    pl.BlockSpec(memory_space=pl.ANY),
                    pl.BlockSpec((k, k, cin_p, ct),
                                 lambda b, rt, co: (0, 0, 0, co)),
                    pl.BlockSpec((1, ct), lambda b, rt, co: (0, co)),
                    pl.BlockSpec((1, ct), lambda b, rt, co: (0, co)),
                ],
                out_specs=pl.BlockSpec((None, toh, owp, ct),
                                       lambda b, rt, co: (b, rt, 0, co)),
                scratch_shapes=[
                    pltpu.VMEM((slab_rows, wp_in, cin_p), jnp.bfloat16),
                    pltpu.SemaphoreType.DMA,
                ],
            ),
            compiler_params=pltpu.CompilerParams(
                # co must stay on one core: the slab fetched at co==0 is reused
                # by the following co steps of the same (b, rt).
                dimension_semantics=("parallel", "parallel", "arbitrary"),
                vmem_limit_bytes=vmem_limit),
        )(x_pad, w_p, scale_p, shift_p)

    out = out[:, :oh, :ow, :cout]                      # drop spatial/Cout padding
    return jnp.transpose(out, (0, 3, 1, 2))            # back to NCHW


# --------------------------------------------------------------------------- #
# Pure-JAX reference (mirrors the PyTorch forward)
# --------------------------------------------------------------------------- #
def _reference_forward(x_nchw, conv_w, bn_weight, bn_bias,
                       running_mean, running_var,
                       *, stride=1, pad=1, eps=1e-5, negative_slope=0.1,
                       cast_bf16=False):
    if cast_bf16:
        xa, wa = x_nchw.astype(jnp.bfloat16), conv_w.astype(jnp.bfloat16)
    else:
        xa, wa = x_nchw, conv_w
    y = lax.conv_general_dilated(
        xa, wa, window_strides=(stride, stride),
        padding=((pad, pad), (pad, pad)),
        dimension_numbers=("NCHW", "OIHW", "NCHW"),
        preferred_element_type=jnp.float32)
    scale = bn_weight / jnp.sqrt(running_var + eps)
    shift = bn_bias - running_mean * scale
    y = y * scale[None, :, None, None] + shift[None, :, None, None]
    return jnp.where(y > 0, y, negative_slope * y)


def _run_case(key, n, cin, cout, k, stride, pad, hw):
    kx, kw_, kg, kb = jax.random.split(key, 4)
    x = jax.random.normal(kx, (n, cin, hw, hw), dtype=jnp.float32)
    conv_w = 0.1 * jax.random.normal(kw_, (cout, cin, k, k), dtype=jnp.float32)
    bn_weight = 1.0 + 0.1 * jax.random.normal(kg, (cout,), dtype=jnp.float32)
    bn_bias = 0.1 * jax.random.normal(kb, (cout,), dtype=jnp.float32)
    running_mean = jnp.zeros((cout,), dtype=jnp.float32)
    running_var = jnp.ones((cout,), dtype=jnp.float32)

    out = convolutional_forward(x, conv_w, bn_weight, bn_bias,
                                running_mean, running_var,
                                stride=stride, pad=pad)
    out = jax.block_until_ready(out)
    oh = (hw + 2 * pad - k) // stride + 1
    assert out.shape == (n, cout, oh, oh), out.shape

    # Strict check vs a reference that uses the same bf16-operand / f32-acc recipe.
    ref_bf16 = _reference_forward(x, conv_w, bn_weight, bn_bias,
                                  running_mean, running_var,
                                  stride=stride, pad=pad, cast_bf16=True)
    assert jnp.allclose(out, ref_bf16, atol=1e-3, rtol=1e-3), \
        "mismatch vs bf16-recipe reference"

    # Looser semantic check vs the full-f32 PyTorch-equivalent forward.
    ref_f32 = _reference_forward(x, conv_w, bn_weight, bn_bias,
                                 running_mean, running_var,
                                 stride=stride, pad=pad, cast_bf16=False)
    assert jnp.allclose(out, ref_f32, atol=1e-1, rtol=5e-2), \
        "mismatch vs f32 reference"
    return out


if __name__ == "__main__":
    key = jax.random.PRNGKey(0)
    k1, k2, k3 = jax.random.split(key, 3)

    # 1) Required small config (im2col path): batch=2, channels=4, spatial=16.
    _run_case(k1, n=2, cin=4, cout=8, k=3, stride=1, pad=1, hw=16)

    # 2) Large-Cin config (tap-loop path with manual halo DMA).
    _run_case(k2, n=1, cin=64, cout=32, k=3, stride=1, pad=1, hw=16)

    # 3) Strided config (stride handled via the im2col path).
    _run_case(k3, n=1, cin=4, cout=8, k=3, stride=2, pad=1, hw=16)

    print("KERNEL_OK")
</pallas_src>

<mosaic_0001>
module attributes {stable_mosaic.version = 11 : i64} {
  func.func @_matmul_bn_leaky_kernel(%arg0: i32, %arg1: i32, %arg2: i32, %arg3: memref<1x16x16x128xbf16, #tpu.memory_space<vmem>>, %arg4: memref<128x128xbf16, #tpu.memory_space<vmem>>, %arg5: memref<1x128xf32, #tpu.memory_space<vmem>>, %arg6: memref<1x128xf32, #tpu.memory_space<vmem>>, %arg7: memref<1x16x16x128xf32, #tpu.memory_space<vmem>>) attributes {dimension_semantics = [#tpu.dimension_semantics<parallel>, #tpu.dimension_semantics<parallel>, #tpu.dimension_semantics<parallel>], iteration_bounds = array<i64: 2, 1, 1>, scalar_prefetch = 0 : i64, scratch_operands = 0 : i64, tpu.core_type = #tpu.core_type<tc>, window_params = [{transform_indices = @transform_0, window_bounds = array<i64: 1, 16, 16, 128>}, {transform_indices = @transform_1, window_bounds = array<i64: 128, 128>}, {transform_indices = @transform_2, window_bounds = array<i64: 1, 128>}, {transform_indices = @transform_3, window_bounds = array<i64: 1, 128>}, {transform_indices = @transform_4, window_bounds = array<i64: 1, 16, 16, 128>}]} {
    %c0 = arith.constant 0 : index
    %c0_0 = arith.constant 0 : index
    %c0_1 = arith.constant 0 : index
    %c0_2 = arith.constant 0 : index
    %0 = vector.load %arg3[%c0, %c0_0, %c0_1, %c0_2] : memref<1x16x16x128xbf16, #tpu.memory_space<vmem>>, vector<1x16x16x128xbf16>
    %1 = vector.shape_cast %0 : vector<1x16x16x128xbf16> to vector<16x16x128xbf16>
    %2 = vector.shape_cast %1 : vector<16x16x128xbf16> to vector<256x128xbf16>
    %c0_3 = arith.constant 0 : index
    %c0_4 = arith.constant 0 : index
    %3 = vector.load %arg4[%c0_3, %c0_4] : memref<128x128xbf16, #tpu.memory_space<vmem>>, vector<128x128xbf16>
    %cst = arith.constant dense<0.000000e+00> : vector<256x128xf32>
    %4 = tpu.matmul %2, %3, %cst {dimension_numbers = #tpu.dot_dimension_numbers<[1], [0], [0], [1], [0, 0, 1, 1], [], []>} : vector<256x128xbf16>, vector<128x128xbf16>, vector<256x128xf32> -> vector<256x128xf32>
    %c0_5 = arith.constant 0 : index
    %c0_6 = arith.constant 0 : index
    %5 = vector.load %arg5[%c0_5, %c0_6] : memref<1x128xf32, #tpu.memory_space<vmem>>, vector<1x128xf32>
    %6 = vector.broadcast %5 : vector<1x128xf32> to vector<256x128xf32>
    %7 = arith.mulf %4, %6 : vector<256x128xf32>
    %c0_7 = arith.constant 0 : index
    %c0_8 = arith.constant 0 : index
    %8 = vector.load %arg6[%c0_7, %c0_8] : memref<1x128xf32, #tpu.memory_space<vmem>>, vector<1x128xf32>
    %9 = vector.broadcast %8 : vector<1x128xf32> to vector<256x128xf32>
    %10 = arith.addf %7, %9 : vector<256x128xf32>
    %cst_9 = arith.constant 0.000000e+00 : f32
    %11 = vector.broadcast %cst_9 : f32 to vector<256x128xf32>
    %12 = arith.cmpf ogt, %10, %11 : vector<256x128xf32>
    %cst_10 = arith.constant 1.000000e-01 : f32
    %13 = vector.broadcast %cst_10 : f32 to vector<256x128xf32>
    %14 = arith.mulf %13, %10 : vector<256x128xf32>
    %15 = arith.select %12, %10, %14 : vector<256x128xi1>, vector<256x128xf32>
    %16 = vector.shape_cast %15 : vector<256x128xf32> to vector<16x16x128xf32>
    %c0_11 = arith.constant 0 : index
    %c0_12 = arith.constant 0 : index
    %c0_13 = arith.constant 0 : index
    %c0_14 = arith.constant 0 : index
    %17 = vector.load %arg7[%c0_11, %c0_12, %c0_13, %c0_14] : memref<1x16x16x128xf32, #tpu.memory_space<vmem>>, vector<1x16x16x128xf32>
    %18 = vector.shape_cast %17 : vector<1x16x16x128xf32> to vector<16x16x128xf32>
    %19 = vector.shape_cast %16 : vector<16x16x128xf32> to vector<1x16x16x128xf32>
    tpu.vector_store %arg7[%c0_11, %c0_12, %c0_13, %c0_14], %19 {strides = array<i32>} : memref<1x16x16x128xf32, #tpu.memory_space<vmem>>, vector<1x16x16x128xf32>,
    return
  }
  func.func @transform_0(%arg0: i32, %arg1: i32, %arg2: i32) -> (i32, i32, i32, i32) {
    %c0_i32 = arith.constant 0 : i32
    %c0_i32_0 = arith.constant 0 : i32
    %c0_i32_1 = arith.constant 0 : i32
    return %arg0, %arg1, %c0_i32, %c0_i32_0 : i32, i32, i32, i32
  }
  func.func @transform_1(%arg0: i32, %arg1: i32, %arg2: i32) -> (i32, i32) {
    %c0_i32 = arith.constant 0 : i32
    %c0_i32_0 = arith.constant 0 : i32
    return %c0_i32, %arg2 : i32, i32
  }
  func.func @transform_2(%arg0: i32, %arg1: i32, %arg2: i32) -> (i32, i32) {
    %c0_i32 = arith.constant 0 : i32
    %c0_i32_0 = arith.constant 0 : i32
    return %c0_i32, %arg2 : i32, i32
  }
  func.func @transform_3(%arg0: i32, %arg1: i32, %arg2: i32) -> (i32, i32) {
    %c0_i32 = arith.constant 0 : i32
    %c0_i32_0 = arith.constant 0 : i32
    return %c0_i32, %arg2 : i32, i32
  }
  func.func @transform_4(%arg0: i32, %arg1: i32, %arg2: i32) -> (i32, i32, i32, i32) {
    %c0_i32 = arith.constant 0 : i32
    %c0_i32_0 = arith.constant 0 : i32
    return %arg0, %arg1, %c0_i32, %arg2 : i32, i32, i32, i32
  }
}

</mosaic_0001>

<llo_original>
// kernel: tpu_custom_call.1
$region0: #{tpu_custom_call.1}
  #allocation0 [shape = 'u32[]', space=smem, size = 0x4, offset = 0x4, fixed_abs, tag = 'smem constant byte address 0x4 - core index']
  #allocation1 [shape = 'u32[144,128]{1,0:T(1,128)}', space=vmem, size = 0x12000, scoped, tag = 'internal scratch']
  %s0 = inlined_call_operand.hbm [shape: bf16[2,16,16,128], index: 0, kind: input, shape index: {}]
  %s1 = inlined_call_operand.hbm [shape: bf16[128,128], index: 1, kind: input, shape index: {}]
  %s2 = inlined_call_operand.vmem [shape: f32[1,128], index: 2, kind: input, shape index: {}]
  %s3 = inlined_call_operand.vmem [shape: f32[1,128], index: 3, kind: input, shape index: {}]
  %s4 = inlined_call_operand.hbm [shape: f32[2,16,16,128], index: 4, kind: output, shape index: {}]
  %s5 = sld [smem:[#allocation0]]
  $region57: #{tpu_custom_call.1} parent=0
    _
  %s7 = ssub.s32 1, %s5
  %s8 = scalar_select 0, %s7, %s5
  $region1: #{tpu_custom_call.1} parent=0
    #allocation2 [shape = 'u8[131072]{0}', space=vmem, size = 0x20000, scoped, tag = 'input window, operand 0']
    #allocation3 [shape = 's32[2]{0}', space=sflag, size = 0x8, scoped, tag = 'scoped memory for tpu_custom_call.1']
    #allocation4 [shape = 's32[2]{0}', space=sflag, size = 0x8, scoped, tag = 'scoped memory for tpu_custom_call.1']
    #allocation5 [shape = 'u8[32768]{0}', space=vmem, size = 0x8000, scoped, tag = 'input window, operand 1, single buffered']
    #allocation6 [shape = 's32[1]{0}', space=sflag, size = 0x4, scoped, tag = 'scoped memory for tpu_custom_call.1']
    #allocation7 [shape = 'u8[262144]{0}', space=vmem, size = 0x40000, scoped, tag = 'output window, operand 0']
    %9 = vsyncpa [#allocation3], 0
    %s10 = scalar_lea.sflag [#allocation3], 1
    %11 = vsyncpa %s10, 0
    %12 = vsyncpa [#allocation6], 0
    %13 = vsyncpa [#allocation4], 0
    %s14 = scalar_lea.sflag [#allocation4], 1
    %15 = vsyncpa %s14, 0
    loop: start=0, step=1, limit=4
    $region2: #{tpu_custom_call.1} parent=1 // loop_pre_header
      _
    $region3: #{tpu_custom_call.1} parent=1 // loop_header
      %s17 = sphi 0, %s21
      %p18 = scmp.ge.s32.totalorder %s17, 4
      %s24 = sphi 0, %s43
      %s25 = sphi 0, %s39
      %s26 = sphi 0, %s35
      %s27 = sphi 0, %s24
      %s28 = sphi 0, %s25
      %s29 = sphi 0, %s26
      %s30 = sphi 0, %s27
      %s31 = sphi 0, %s28
      %s32 = sphi 0, %s29
      %s48 = sphi 0, %s50
      %s51 = sphi 0, %s48
      %s52 = sphi 0, %s51
      %s68 = sphi 0, %s52
      %s74 = sphi 0, %s76
      %s77 = sphi 0, %s74
      %s78 = sphi 0, %s77
      %s94 = sphi 0, %s78
      %s100 = sphi 0, %s102
      %s103 = sphi 0, %s100
      %s104 = sphi 0, %s103
      %s120 = sphi 0, %s104
      %s126 = sphi 0, %s128
      %s129 = sphi 0, %s126
      %s130 = sphi 0, %s129
      %s146 = sphi 0, %s130
      %s156 = sphi 0, %s158
      %s159 = sphi 0, %s156
      %s160 = sphi 0, %s159
      %s176 = sphi 0, %s160
    $region4: #{tpu_custom_call.1} parent=1 // loop_header_branch
      %20 = sbr.rel (%p18) target = $region8
    $region5: #{tpu_custom_call.1} parent=1 // loop_body
      %s22 = ssub.s32 %s17, 1
      %s23 = ssub.s32 %s17, 2
      %s33 = sadd.s32 1, %s26
      %p34 = scmp.ge.s32.totalorder %s33, 1
      %s35 = scalar_select %p34, 0, %s33
      %s36 = sadd.s32 1, %s25
      %s37 = scalar_select %p34, %s36, %s25
      %p38 = scmp.ge.s32.totalorder %s37, 1
      %s39 = scalar_select %p38, 0, %s37
      %s40 = sadd.s32 1, %s24
      %s41 = scalar_select %p38, %s40, %s24
      %p42 = scmp.ge.s32.totalorder %s41, 2
      %s43 = scalar_select %p42, 0, %s41
      %s44 = ssub.s32 %s24, %s43
      %s45 = ssub.s32 %s25, %s39
      %s46 = sor.u32 %s44, %s45
      %p47 = scmp.eq.s32.totalorder %s46, 0
      %s49 = sadd.s32 %s48, 1
      %s50 = scalar_select %p47, %s48, %s49
      %p53 = pneg %p47
      %p54 = scmp.eq.s32.totalorder %s17, 1
      %p55 = por %p53, %p54
      %p56 = scmp.ne.s32.totalorder %s48, %s51
      %p57 = scmp.eq.s32.totalorder %s17, 0
      %p58 = por %p56, %p57
      %p59 = scmp.ne.s32.totalorder %s48, %s51
      %p60 = scmp.eq.s32.totalorder %s22, 1
      %p61 = por %p59, %p60
      %p62 = scmp.ne.s32.totalorder %s51, %s52
      %p63 = scmp.eq.s32.totalorder %s22, 0
      %p64 = por %p62, %p63
      %p65 = scmp.ne.s32.totalorder %s51, %s52
      %p66 = scmp.eq.s32.totalorder %s23, 1
      %p67 = por %p65, %p66
      %p69 = scmp.ne.s32.totalorder %s52, %s68
      %p70 = scmp.eq.s32.totalorder %s23, 0
      %p71 = por %p69, %p70
      %s72 = ssub.s32 %s26, %s35
      %p73 = scmp.eq.s32.totalorder %s72, 0
      %s75 = sadd.s32 %s74, 1
      %s76 = scalar_select %p73, %s74, %s75
      %p79 = pneg %p73
      %p80 = scmp.eq.s32.totalorder %s17, 1
      %p81 = por %p79, %p80
      %p82 = scmp.ne.s32.totalorder %s74, %s77
      %p83 = scmp.eq.s32.totalorder %s17, 0
      %p84 = por %p82, %p83
      %p85 = scmp.ne.s32.totalorder %s74, %s77
      %p86 = scmp.eq.s32.totalorder %s22, 1
      %p87 = por %p85, %p86
      %p88 = scmp.ne.s32.totalorder %s77, %s78
      %p89 = scmp.eq.s32.totalorder %s22, 0
      %p90 = por %p88, %p89
      %p91 = scmp.ne.s32.totalorder %s77, %s78
      %p92 = scmp.eq.s32.totalorder %s23, 1
      %p93 = por %p91, %p92
      %p95 = scmp.ne.s32.totalorder %s78, %s94
      %p96 = scmp.eq.s32.totalorder %s23, 0
      %p97 = por %p95, %p96
      %s98 = ssub.s32 %s26, %s35
      %p99 = scmp.eq.s32.totalorder %s98, 0
      %s101 = sadd.s32 %s100, 1
      %s102 = scalar_select %p99, %s100, %s101
      %p105 = pneg %p99
      %p106 = scmp.eq.s32.totalorder %s17, 1
      %p107 = por %p105, %p106
      %p108 = scmp.ne.s32.totalorder %s100, %s103
      %p109 = scmp.eq.s32.totalorder %s17, 0
      %p110 = por %p108, %p109
      %p111 = scmp.ne.s32.totalorder %s100, %s103
      %p112 = scmp.eq.s32.totalorder %s22, 1
      %p113 = por %p111, %p112
      %p114 = scmp.ne.s32.totalorder %s103, %s104
      %p115 = scmp.eq.s32.totalorder %s22, 0
      %p116 = por %p114, %p115
      %p117 = scmp.ne.s32.totalorder %s103, %s104
      %p118 = scmp.eq.s32.totalorder %s23, 1
      %p119 = por %p117, %p118
      %p121 = scmp.ne.s32.totalorder %s104, %s120
      %p122 = scmp.eq.s32.totalorder %s23, 0
      %p123 = por %p121, %p122
      %s124 = ssub.s32 %s26, %s35
      %p125 = scmp.eq.s32.totalorder %s124, 0
      %s127 = sadd.s32 %s126, 1
      %s128 = scalar_select %p125, %s126, %s127
      %p131 = pneg %p125
      %p132 = scmp.eq.s32.totalorder %s17, 1
      %p133 = por %p131, %p132
      %p134 = scmp.ne.s32.totalorder %s126, %s129
      %p135 = scmp.eq.s32.totalorder %s17, 0
      %p136 = por %p134, %p135
      %p137 = scmp.ne.s32.totalorder %s126, %s129
      %p138 = scmp.eq.s32.totalorder %s22, 1
      %p139 = por %p137, %p138
      %p140 = scmp.ne.s32.totalorder %s129, %s130
      %p141 = scmp.eq.s32.totalorder %s22, 0
      %p142 = por %p140, %p141
      %p143 = scmp.ne.s32.totalorder %s129, %s130
      %p144 = scmp.eq.s32.totalorder %s23, 1
      %p145 = por %p143, %p144
      %p147 = scmp.ne.s32.totalorder %s130, %s146
      %p148 = scmp.eq.s32.totalorder %s23, 0
      %p149 = por %p147, %p148
      %s150 = ssub.s32 %s24, %s43
      %s151 = ssub.s32 %s25, %s39
      %s152 = sor.u32 %s150, %s151
      %s153 = ssub.s32 %s26, %s35
      %s154 = sor.u32 %s152, %s153
      %p155 = scmp.eq.s32.totalorder %s154, 0
      %s157 = sadd.s32 %s156, 1
      %s158 = scalar_select %p155, %s156, %s157
      %p161 = pneg %p155
      %p162 = scmp.eq.s32.totalorder %s17, 1
      %p163 = por %p161, %p162
      %p164 = scmp.ne.s32.totalorder %s156, %s159
      %p165 = scmp.eq.s32.totalorder %s17, 0
      %p166 = por %p164, %p165
      %p167 = scmp.ne.s32.totalorder %s156, %s159
      %p168 = scmp.eq.s32.totalorder %s22, 1
      %p169 = por %p167, %p168
      %p170 = scmp.ne.s32.totalorder %s159, %s160
      %p171 = scmp.eq.s32.totalorder %s22, 0
      %p172 = por %p170, %p171
      %p173 = scmp.ne.s32.totalorder %s159, %s160
      %p174 = scmp.eq.s32.totalorder %s23, 1
      %p175 = por %p173, %p174
      %p177 = scmp.ne.s32.totalorder %s160, %s176
      %p178 = scmp.eq.s32.totalorder %s23, 0
      %p179 = por %p177, %p178
      %p180 = scmp.le.s32.totalorder 1, %s17
      %p181 = scmp.lt.s32.totalorder %s17, 3
      %p182 = pnand %p180, %p181
      %p183 = pneg %p182
      // Predicated region
      $region9: #{tpu_custom_call.1} parent=5 // pred_check
        _
      $region10: #{tpu_custom_call.1} parent=5 // pred_check_branch
        %185 = sbr.rel (%p182) target = $region12
      $region11: #{tpu_custom_call.1} parent=5 // pred_region
        %s186 = ssub.s32 %s17, 1
        // Predicated region
        $region13: #{tpu_custom_call.1} parent=11 // pred_check
          %p187 = pneg %p90
        $region14: #{tpu_custom_call.1} parent=11 // pred_check_branch
          %189 = sbr.rel (%p187) target = $region16
        $region15: #{tpu_custom_call.1} parent=11 // pred_region
          %s191 = ssub.s32 1024, 1024
          %192 = vsyncadd [#allocation6], %s191
          %s193 = smul.addr %s29, 64
          %s194 = scalar_lea.hbm %s1, %s193
          %s195 = sshll.u32 [#allocation5], 4
          %s196 = int_to_ptr.vmem [resolvable:$true] %s195
          %201 = dma.hbm_to_vmem [thread:$0]  %s194, 1024, %s196, [#allocation6], 64, 64, 4
        $region16: #{tpu_custom_call.1} parent=11 // pred_fallthru
          _
        // Predicated region
        $region17: #{tpu_custom_call.1} parent=11 // pred_check
          %p202 = pneg %p116
        $region18: #{tpu_custom_call.1} parent=11 // pred_check_branch
          %204 = sbr.rel (%p202) target = $region20
        $region19: #{tpu_custom_call.1} parent=11 // pred_region
          %p205 = scmp.lt.s32.totalorder %s29, 0
          %s206 = scalar_select %p205, %s29, 0
          %s207 = scalar_lea.vmem %s2, %s206
        $region20: #{tpu_custom_call.1} parent=11 // pred_fallthru
          _
        // Predicated region
        $region21: #{tpu_custom_call.1} parent=11 // pred_check
          %p208 = pneg %p142
        $region22: #{tpu_custom_call.1} parent=11 // pred_check_branch
          %210 = sbr.rel (%p208) target = $region24
        $region23: #{tpu_custom_call.1} parent=11 // pred_region
          %p211 = scmp.lt.s32.totalorder %s29, 0
          %s212 = scalar_select %p211, %s29, 0
          %s213 = scalar_lea.vmem %s3, %s212
        $region24: #{tpu_custom_call.1} parent=11 // pred_fallthru
          _
      $region12: #{tpu_custom_call.1} parent=5 // pred_fallthru
        _
      %p214 = scmp.lt.s32.totalorder %s17, 2
      // Predicated region
      $region25: #{tpu_custom_call.1} parent=5 // pred_check
        %p215 = pneg %p214
      $region26: #{tpu_custom_call.1} parent=5 // pred_check_branch
        %217 = sbr.rel (%p215) target = $region28
      $region27: #{tpu_custom_call.1} parent=5 // pred_region
        // Predicated region
        $region29: #{tpu_custom_call.1} parent=27 // pred_check
          %p218 = pneg %p58
        $region30: #{tpu_custom_call.1} parent=27 // pred_check_branch
          %220 = sbr.rel (%p218) target = $region32
        $region31: #{tpu_custom_call.1} parent=27 // pred_region
          %s221 = sand.u32 %s48, 1
          %s222 = scalar_lea.sflag [#allocation3], %s221
          %s223 = sand.u32 %s48, 1
          %s224 = smul.addr %s223, 128
          %s225 = scalar_lea.vmem [#allocation2], %s224
          %s226 = smul.u32 16, %s25
          %s228 = ssub.s32 2048, 2048
          %229 = vsyncadd %s222, %s228
          %s230 = smul.addr %s226, 2
          %s231 = smul.addr %s24, 32
          %s232 = sadd.s32 %s230, %s231
          %s233 = smul.addr %s232, 64
          %s234 = scalar_lea.hbm %s0, %s233
          %s235 = sshll.u32 %s225, 4
          %s236 = int_to_ptr.vmem [resolvable:$true] %s235
          %241 = dma.hbm_to_vmem [thread:$0]  %s234, 2048, %s236, %s222, 64, 64, 4
        $region32: #{tpu_custom_call.1} parent=27 // pred_fallthru
          _
      $region28: #{tpu_custom_call.1} parent=5 // pred_fallthru
        _
      %p242 = scmp.le.s32.totalorder 1, %s17
      %p243 = scmp.lt.s32.totalorder %s17, 3
      %p244 = pnand %p242, %p243
      %p245 = pneg %p244
      // Predicated region
      $region33: #{tpu_custom_call.1} parent=5 // pred_check
        _
      $region34: #{tpu_custom_call.1} parent=5 // pred_check_branch
        %247 = sbr.rel (%p244) target = $region36
      $region35: #{tpu_custom_call.1} parent=5 // pred_region
        %s248 = ssub.s32 %s17, 1
        %s249 = sand.u32 %s51, 1
        %s250 = scalar_lea.sflag [#allocation3], %s249
        %s251 = sand.u32 %s51, 1
        %s252 = smul.addr %s251, 128
        %s253 = scalar_lea.vmem [#allocation2], %s252
        // Predicated region
        $region37: #{tpu_custom_call.1} parent=35 // pred_check
          %p254 = pneg %p64
        $region38: #{tpu_custom_call.1} parent=35 // pred_check_branch
          %256 = sbr.rel (%p254) target = $region40
        $region39: #{tpu_custom_call.1} parent=35 // pred_region
          %257 = dma.done %s250, 2048
        $region40: #{tpu_custom_call.1} parent=35 // pred_fallthru
          _
        // Predicated region
        $region41: #{tpu_custom_call.1} parent=35 // pred_check
          %p258 = pneg %p90
        $region42: #{tpu_custom_call.1} parent=35 // pred_check_branch
          %260 = sbr.rel (%p258) target = $region44
        $region43: #{tpu_custom_call.1} parent=35 // pred_region
          %261 = dma.done [#allocation6], 1024
        $region44: #{tpu_custom_call.1} parent=35 // pred_fallthru
          _
        %s262 = sand.u32 %s51, 1
        %s263 = scalar_lea.sflag [#allocation3], %s262
        %s264 = sand.u32 %s51, 1
        %s265 = smul.addr %s264, 128
        %s266 = scalar_lea.vmem [#allocation2], %s265
        %p267 = pneg %p64
        %p268 = pneg %p61
        %p269 = pneg %p90
        %p270 = pneg %p87
        %p271 = scmp.lt.s32.totalorder %s29, 0
        %s272 = scalar_select %p271, %s29, 0
        %s273 = scalar_lea.vmem %s2, %s272
        %p274 = pneg %p116
        %p275 = pneg %p113
        %p276 = scmp.lt.s32.totalorder %s29, 0
        %s277 = scalar_select %p276, %s29, 0
        %s278 = scalar_lea.vmem %s3, %s277
        %p279 = pneg %p142
        %p280 = pneg %p139
        %p281 = pneg %p172
        %p282 = pneg %p169
        %s283 = sand.u32 %s159, 1
        %s284 = scalar_lea.sflag [#allocation4], %s283
        %s285 = sand.u32 %s159, 1
        %s286 = smul.addr %s285, 256
        %s287 = scalar_lea.vmem [#allocation7], %s286
        %s288 = smul.u32 16, %s28
        %p289 = scmp.lt.s32.totalorder %s29, 0
        %s290 = scalar_select %p289, %s29, 0
        %s291 = scalar_lea.vmem %s2, %s290
        %p292 = scmp.lt.s32.totalorder %s29, 0
        %s293 = scalar_select %p292, %s29, 0
        %s294 = scalar_lea.vmem %s3, %s293
        %s295 = smul.u32 16, %s28
        %v297 = vld [vmem:[%s253] sm:$0xf]
        %v298 = vld [vmem:[%s253 + $0x4] sm:$0xf]
        %v299 = vld [vmem:[%s253 + $0x8] sm:$0xf]
        %v300 = vld [vmem:[%s253 + $0xc] sm:$0xf]
        %v301 = vld [vmem:[%s253 + $0x10] sm:$0xf]
        %v302 = vld [vmem:[%s253 + $0x14] sm:$0xf]
        %v303 = vld [vmem:[%s253 + $0x18] sm:$0xf]
        %v304 = vld [vmem:[%s253 + $0x1c] sm:$0xf]
        %v305 = vld [vmem:[%s253 + $0x20] sm:$0xf]
        %v306 = vld [vmem:[%s253 + $0x24] sm:$0xf]
        %v307 = vld [vmem:[%s253 + $0x28] sm:$0xf]
        %v308 = vld [vmem:[%s253 + $0x2c] sm:$0xf]
        %v309 = vld [vmem:[%s253 + $0x30] sm:$0xf]
        %v310 = vld [vmem:[%s253 + $0x34] sm:$0xf]
        %v311 = vld [vmem:[%s253 + $0x38] sm:$0xf]
        %v312 = vld [vmem:[%s253 + $0x3c] sm:$0xf]
        %v313 = vld [vmem:[%s253 + $0x40] sm:$0xf]
        %v314 = vld [vmem:[%s253 + $0x44] sm:$0xf]
        %v315 = vld [vmem:[%s253 + $0x48] sm:$0xf]
        %v316 = vld [vmem:[%s253 + $0x4c] sm:$0xf]
        %v317 = vld [vmem:[%s253 + $0x50] sm:$0xf]
        %v318 = vld [vmem:[%s253 + $0x54] sm:$0xf]
        %v319 = vld [vmem:[%s253 + $0x58] sm:$0xf]
        %v320 = vld [vmem:[%s253 + $0x5c] sm:$0xf]
        %v321 = vld [vmem:[%s253 + $0x60] sm:$0xf]
        %v322 = vld [vmem:[%s253 + $0x64] sm:$0xf]
        %v323 = vld [vmem:[%s253 + $0x68] sm:$0xf]
        %v324 = vld [vmem:[%s253 + $0x6c] sm:$0xf]
        %v325 = vld [vmem:[%s253 + $0x70] sm:$0xf]
        %v326 = vld [vmem:[%s253 + $0x74] sm:$0xf]
        %v327 = vld [vmem:[%s253 + $0x78] sm:$0xf]
        %v328 = vld [vmem:[%s253 + $0x7c] sm:$0xf]
        %v329 = vld [vmem:[#allocation5] sm:$0xf]
        %v330 = vld [vmem:[#allocation5 + $0x4] sm:$0xf]
        %v331 = vld [vmem:[#allocation5 + $0x8] sm:$0xf]
        %v332 = vld [vmem:[#allocation5 + $0xc] sm:$0xf]
        %v333 = vld [vmem:[#allocation5 + $0x10] sm:$0xf]
        %v334 = vld [vmem:[#allocation5 + $0x14] sm:$0xf]
        %v335 = vld [vmem:[#allocation5 + $0x18] sm:$0xf]
        %v336 = vld [vmem:[#allocation5 + $0x1c] sm:$0xf]
        %v337 = vld [vmem:[#allocation5 + $0x20] sm:$0xf]
        %v338 = vld [vmem:[#allocation5 + $0x24] sm:$0xf]
        %v339 = vld [vmem:[#allocation5 + $0x28] sm:$0xf]
        %v340 = vld [vmem:[#allocation5 + $0x2c] sm:$0xf]
        %v341 = vld [vmem:[#allocation5 + $0x30] sm:$0xf]
        %v342 = vld [vmem:[#allocation5 + $0x34] sm:$0xf]
        %v343 = vld [vmem:[#allocation5 + $0x38] sm:$0xf]
        %v344 = vld [vmem:[#allocation5 + $0x3c] sm:$0xf]
        %v377 = vunpack.c.l.b16 %v297
        %v378 = vunpack.c.l.b16 %v298
        %v379 = vunpack.c.l.b16 %v299
        %v380 = vunpack.c.l.b16 %v300
        %v381 = vunpack.c.l.b16 %v301
        %v382 = vunpack.c.l.b16 %v302
        %v383 = vunpack.c.l.b16 %v303
        %v384 = vunpack.c.l.b16 %v304
        %v385 = vunpack.c.l.b16 %v305
        %v386 = vunpack.c.l.b16 %v306
        %v387 = vunpack.c.l.b16 %v307
        %v388 = vunpack.c.l.b16 %v308
        %v389 = vunpack.c.l.b16 %v309
        %v390 = vunpack.c.l.b16 %v310
        %v391 = vunpack.c.l.b16 %v311
        %v392 = vunpack.c.l.b16 %v312
        %v393 = vunpack.c.l.b16 %v313
        %v394 = vunpack.c.l.b16 %v314
        %v395 = vunpack.c.l.b16 %v315
        %v396 = vunpack.c.l.b16 %v316
        %v397 = vunpack.c.l.b16 %v317
        %v398 = vunpack.c.l.b16 %v318
        %v399 = vunpack.c.l.b16 %v319
        %v400 = vunpack.c.l.b16 %v320
        %v401 = vunpack.c.l.b16 %v321
        %v402 = vunpack.c.l.b16 %v322
        %v403 = vunpack.c.l.b16 %v323
        %v404 = vunpack.c.l.b16 %v324
        %v405 = vunpack.c.l.b16 %v325
        %v406 = vunpack.c.l.b16 %v326
        %v407 = vunpack.c.l.b16 %v327
        %v408 = vunpack.c.l.b16 %v328
        %v409 = vpack.c.b16 %v378, %v377
        %v410 = vpack.c.b16 %v380, %v379
        %v411 = vpack.c.b16 %v382, %v381
        %v412 = vpack.c.b16 %v384, %v383
        %v413 = vpack.c.b16 %v386, %v385
        %v414 = vpack.c.b16 %v388, %v387
        %v415 = vpack.c.b16 %v390, %v389
        %v416 = vpack.c.b16 %v392, %v391
        %v417 = vpack.c.b16 %v394, %v393
        %v418 = vpack.c.b16 %v396, %v395
        %v419 = vpack.c.b16 %v398, %v397
        %v420 = vpack.c.b16 %v400, %v399
        %v421 = vpack.c.b16 %v402, %v401
        %v422 = vpack.c.b16 %v404, %v403
        %v423 = vpack.c.b16 %v406, %v405
        %v424 = vpack.c.b16 %v408, %v407
        %v457 = vunpack.c.l.b16 %v329
        %v458 = vunpack.c.l.b16 %v330
        %v459 = vunpack.c.l.b16 %v331
        %v460 = vunpack.c.l.b16 %v332
        %v461 = vunpack.c.l.b16 %v333
        %v462 = vunpack.c.l.b16 %v334
        %v463 = vunpack.c.l.b16 %v335
        %v464 = vunpack.c.l.b16 %v336
        %v465 = vunpack.c.l.b16 %v337
        %v466 = vunpack.c.l.b16 %v338
        %v467 = vunpack.c.l.b16 %v339
        %v468 = vunpack.c.l.b16 %v340
        %v469 = vunpack.c.l.b16 %v341
        %v470 = vunpack.c.l.b16 %v342
        %v471 = vunpack.c.l.b16 %v343
        %v472 = vunpack.c.l.b16 %v344
        %v473 = vpack.c.b16 %v458, %v457
        %v474 = vpack.c.b16 %v460, %v459
        %v475 = vpack.c.b16 %v462, %v461
        %v476 = vpack.c.b16 %v464, %v463
        %v477 = vpack.c.b16 %v466, %v465
        %v478 = vpack.c.b16 %v468, %v467
        %v479 = vpack.c.b16 %v470, %v469
        %v480 = vpack.c.b16 %v472, %v471
        %489 = vmatprep.subr.bf16.mxu0 0
        %490 = vmatpush1.bf16.msra.mxu0 %v473
        %491 = vmatprep.subr.bf16.mxu0 0
        %492 = vmatpush1.bf16.msra.mxu0 %v474
        %493 = vmatprep.subr.bf16.mxu0 0
        %494 = vmatpush1.bf16.msra.mxu0 %v475
        %495 = vmatprep.subr.bf16.mxu0 0
        %496 = vmatpush1.bf16.msra.mxu0 %v476
        %497 = vmatprep.subr.bf16.mxu0 0
        %498 = vmatpush1.bf16.msra.mxu0 %v477
        %499 = vmatprep.subr.bf16.mxu0 0
        %500 = vmatpush1.bf16.msra.mxu0 %v478
        %501 = vmatprep.subr.bf16.mxu0 0
        %502 = vmatpush1.bf16.msra.mxu0 %v479
        %503 = vmatprep.subr.bf16.mxu0 0
        %504 = vmatpush1.bf16.msra.mxu0 %v480
        %505 = vmatprep.subr.bf16.mxu0 0
        %506 = vmatpush1.bf16.msra.mxu0 0
        %507 = vmatprep.subr.bf16.mxu0 0
        %508 = vmatpush1.bf16.msra.mxu0 0
        %509 = vmatprep.subr.bf16.mxu0 0
        %510 = vmatpush1.bf16.msra.mxu0 0
        %511 = vmatprep.subr.bf16.mxu0 0
        %512 = vmatpush1.bf16.msra.mxu0 0
        %513 = vmatprep.subr.bf16.mxu0 0
        %514 = vmatpush1.bf16.msra.mxu0 0
        %515 = vmatprep.subr.bf16.mxu0 0
        %516 = vmatpush1.bf16.msra.mxu0 0
        %517 = vmatprep.subr.bf16.mxu0 0
        %518 = vmatpush1.bf16.msra.mxu0 0
        %519 = vmatprep.subr.bf16.mxu0 0
        %520 = vmatpush1.bf16.msra.mxu0 0
        %521 = vmatprep.mubr.bf16.mxu0 0
        %522 = vmatmul.mubr.bf16.gmra.mrb[0].mxu0 %v409
        %v523 = vpop.f32.mrb[0].mxu0
        %v524 = vadd.f32 0.0, %v523
        %v525 = vpop.f32.mrb[0].mxu0
        %v526 = vpop.f32.mrb[0].mxu0
        %v527 = vadd.f32 0.0, %v526
        %v528 = vpop.f32.mrb[0].mxu0
        %529 = vmatprep.mubr.bf16.mxu0 0
        %530 = vmatmul.mubr.bf16.gmra.mrb[0].mxu0 %v410
        %v531 = vpop.f32.mrb[0].mxu0
        %v532 = vadd.f32 0.0, %v531
        %v533 = vpop.f32.mrb[0].mxu0
        %v534 = vpop.f32.mrb[0].mxu0
        %v535 = vadd.f32 0.0, %v534
        %v536 = vpop.f32.mrb[0].mxu0
        %537 = vmatprep.mubr.bf16.mxu0 0
        %538 = vmatmul.mubr.bf16.gmra.mrb[0].mxu0 %v411
        %v539 = vpop.f32.mrb[0].mxu0
        %v540 = vadd.f32 0.0, %v539
        %v541 = vpop.f32.mrb[0].mxu0
        %v542 = vpop.f32.mrb[0].mxu0
        %v543 = vadd.f32 0.0, %v542
        %v544 = vpop.f32.mrb[0].mxu0
        %545 = vmatprep.mubr.bf16.mxu0 0
        %546 = vmatmul.mubr.bf16.gmra.mrb[0].mxu0 %v412
        %v547 = vpop.f32.mrb[0].mxu0
        %v548 = vadd.f32 0.0, %v547
        %v549 = vpop.f32.mrb[0].mxu0
        %v550 = vpop.f32.mrb[0].mxu0
        %v551 = vadd.f32 0.0, %v550
        %v552 = vpop.f32.mrb[0].mxu0
        %553 = vmatprep.mubr.bf16.mxu0 0
        %554 = vmatmul.mubr.bf16.gmra.mrb[0].mxu0 %v413
        %v555 = vpop.f32.mrb[0].mxu0
        %v556 = vadd.f32 0.0, %v555
        %v557 = vpop.f32.mrb[0].mxu0
        %v558 = vpop.f32.mrb[0].mxu0
        %v559 = vadd.f32 0.0, %v558
        %v560 = vpop.f32.mrb[0].mxu0
        %561 = vmatprep.mubr.bf16.mxu0 0
        %562 = vmatmul.mubr.bf16.gmra.mrb[0].mxu0 %v414
        %v563 = vpop.f32.mrb[0].mxu0
        %v564 = vadd.f32 0.0, %v563
        %v565 = vpop.f32.mrb[0].mxu0
        %v566 = vpop.f32.mrb[0].mxu0
        %v567 = vadd.f32 0.0, %v566
        %v568 = vpop.f32.mrb[0].mxu0
        %569 = vmatprep.mubr.bf16.mxu0 0
        %570 = vmatmul.mubr.bf16.gmra.mrb[0].mxu0 %v415
        %v571 = vpop.f32.mrb[0].mxu0
        %v572 = vadd.f32 0.0, %v571
        %v573 = vpop.f32.mrb[0].mxu0
        %v574 = vpop.f32.mrb[0].mxu0
        %v575 = vadd.f32 0.0, %v574
        %v576 = vpop.f32.mrb[0].mxu0
        %577 = vmatprep.mubr.bf16.mxu0 0
        %578 = vmatmul.mubr.bf16.gmra.mrb[0].mxu0 %v416
        %v579 = vpop.f32.mrb[0].mxu0
        %v580 = vadd.f32 0.0, %v579
        %v581 = vpop.f32.mrb[0].mxu0
        %v582 = vpop.f32.mrb[0].mxu0
        %v583 = vadd.f32 0.0, %v582
        %v584 = vpop.f32.mrb[0].mxu0
        %585 = vmatprep.mubr.bf16.mxu0 0
        %586 = vmatmul.mubr.bf16.gmra.mrb[0].mxu0 %v417
        %v587 = vpop.f32.mrb[0].mxu0
        %v588 = vadd.f32 0.0, %v587
        %v589 = vpop.f32.mrb[0].mxu0
        %v590 = vpop.f32.mrb[0].mxu0
        %v591 = vadd.f32 0.0, %v590
        %v592 = vpop.f32.mrb[0].mxu0
        %593 = vmatprep.mubr.bf16.mxu0 0
        %594 = vmatmul.mubr.bf16.gmra.mrb[0].mxu0 %v418
        %v595 = vpop.f32.mrb[0].mxu0
        %v596 = vadd.f32 0.0, %v595
        %v597 = vpop.f32.mrb[0].mxu0
        %v598 = vpop.f32.mrb[0].mxu0
        %v599 = vadd.f32 0.0, %v598
        %v600 = vpop.f32.mrb[0].mxu0
        %601 = vmatprep.mubr.bf16.mxu0 0
        %602 = vmatmul.mubr.bf16.gmra.mrb[0].mxu0 %v419
        %v603 = vpop.f32.mrb[0].mxu0
        %v604 = vadd.f32 0.0, %v603
        %v605 = vpop.f32.mrb[0].mxu0
        %v606 = vpop.f32.mrb[0].mxu0
        %v607 = vadd.f32 0.0, %v606
        %v608 = vpop.f32.mrb[0].mxu0
        %609 = vmatprep.mubr.bf16.mxu0 0
        %610 = vmatmul.mubr.bf16.gmra.mrb[0].mxu0 %v420
        %v611 = vpop.f32.mrb[0].mxu0
        %v612 = vadd.f32 0.0, %v611
        %v613 = vpop.f32.mrb[0].mxu0
        %v614 = vpop.f32.mrb[0].mxu0
        %v615 = vadd.f32 0.0, %v614
        %v616 = vpop.f32.mrb[0].mxu0
        %617 = vmatprep.mubr.bf16.mxu0 0
        %618 = vmatmul.mubr.bf16.gmra.mrb[0].mxu0 %v421
        %v619 = vpop.f32.mrb[0].mxu0
        %v620 = vadd.f32 0.0, %v619
        %v621 = vpop.f32.mrb[0].mxu0
        %v622 = vpop.f32.mrb[0].mxu0
        %v623 = vadd.f32 0.0, %v622
        %v624 = vpop.f32.mrb[0].mxu0
        %625 = vmatprep.mubr.bf16.mxu0 0
        %626 = vmatmul.mubr.bf16.gmra.mrb[0].mxu0 %v422
        %v627 = vpop.f32.mrb[0].mxu0
        %v628 = vadd.f32 0.0, %v627
        %v629 = vpop.f32.mrb[0].mxu0
        %v630 = vpop.f32.mrb[0].mxu0
        %v631 = vadd.f32 0.0, %v630
        %v632 = vpop.f32.mrb[0].mxu0
        %633 = vmatprep.mubr.bf16.mxu0 0
        %634 = vmatmul.mubr.bf16.gmra.mrb[0].mxu0 %v423
        %v635 = vpop.f32.mrb[0].mxu0
        %v636 = vadd.f32 0.0, %v635
        %v637 = vpop.f32.mrb[0].mxu0
        %v638 = vpop.f32.mrb[0].mxu0
        %v639 = vadd.f32 0.0, %v638
        %v640 = vpop.f32.mrb[0].mxu0
        %641 = vmatprep.mubr.bf16.mxu0 0
        %642 = vmatmul.mubr.bf16.gmra.mrb[0].mxu0 %v424
        %v643 = vpop.f32.mrb[0].mxu0
        %v644 = vadd.f32 0.0, %v643
        %v645 = vpop.f32.mrb[0].mxu0
        %v646 = vpop.f32.mrb[0].mxu0
        %v647 = vadd.f32 0.0, %v646
        %v648 = vpop.f32.mrb[0].mxu0
        %649 = vdwg.mxu0
        %v650 = vld [vmem:[%s291] sm:$0x1]
        %v652 = vlaneseq
        %v653 = vshrl.u32 %v652, 7
        %v654 = vsub.s32 0, %v653
        %v655 = vrot.slane %v650, %v654
        %v657 = vmul.f32 %v524, %v655
        %v658 = vmul.f32 %v527, %v655
        %v659 = vmul.f32 %v532, %v655
        %v660 = vmul.f32 %v535, %v655
        %v661 = vmul.f32 %v540, %v655
        %v662 = vmul.f32 %v543, %v655
        %v663 = vmul.f32 %v548, %v655
        %v664 = vmul.f32 %v551, %v655
        %v665 = vmul.f32 %v556, %v655
        %v666 = vmul.f32 %v559, %v655
        %v667 = vmul.f32 %v564, %v655
        %v668 = vmul.f32 %v567, %v655
        %v669 = vmul.f32 %v572, %v655
        %v670 = vmul.f32 %v575, %v655
        %v671 = vmul.f32 %v580, %v655
        %v672 = vmul.f32 %v583, %v655
        %v673 = vmul.f32 %v588, %v655
        %v674 = vmul.f32 %v591, %v655
        %v675 = vmul.f32 %v596, %v655
        %v676 = vmul.f32 %v599, %v655
        %v677 = vmul.f32 %v604, %v655
        %v678 = vmul.f32 %v607, %v655
        %v679 = vmul.f32 %v612, %v655
        %v680 = vmul.f32 %v615, %v655
        %v681 = vmul.f32 %v620, %v655
        %v682 = vmul.f32 %v623, %v655
        %v683 = vmul.f32 %v628, %v655
        %v684 = vmul.f32 %v631, %v655
        %v685 = vmul.f32 %v636, %v655
        %v686 = vmul.f32 %v639, %v655
        %v687 = vmul.f32 %v644, %v655
        %v688 = vmul.f32 %v647, %v655
        %v689 = vld [vmem:[%s294] sm:$0x1]
        %v691 = vlaneseq
        %v692 = vshrl.u32 %v691, 7
        %v693 = vsub.s32 0, %v692
        %v694 = vrot.slane %v689, %v693
        %v696 = vadd.f32 %v657, %v694
        %v697 = vadd.f32 %v658, %v694
        %v698 = vadd.f32 %v659, %v694
        %v699 = vadd.f32 %v660, %v694
        %v700 = vadd.f32 %v661, %v694
        %v701 = vadd.f32 %v662, %v694
        %v702 = vadd.f32 %v663, %v694
        %v703 = vadd.f32 %v664, %v694
        %v704 = vadd.f32 %v665, %v694
        %v705 = vadd.f32 %v666, %v694
        %v706 = vadd.f32 %v667, %v694
        %v707 = vadd.f32 %v668, %v694
        %v708 = vadd.f32 %v669, %v694
        %v709 = vadd.f32 %v670, %v694
        %v710 = vadd.f32 %v671, %v694
        %v711 = vadd.f32 %v672, %v694
        %v712 = vadd.f32 %v673, %v694
        %v713 = vadd.f32 %v674, %v694
        %v714 = vadd.f32 %v675, %v694
        %v715 = vadd.f32 %v676, %v694
        %v716 = vadd.f32 %v677, %v694
        %v717 = vadd.f32 %v678, %v694
        %v718 = vadd.f32 %v679, %v694
        %v719 = vadd.f32 %v680, %v694
        %v720 = vadd.f32 %v681, %v694
        %v721 = vadd.f32 %v682, %v694
        %v722 = vadd.f32 %v683, %v694
        %v723 = vadd.f32 %v684, %v694
        %v724 = vadd.f32 %v685, %v694
        %v725 = vadd.f32 %v686, %v694
        %v726 = vadd.f32 %v687, %v694
        %v727 = vadd.f32 %v688, %v694
        %vm728 = vcmp.gt.f32.partialorder %v696, 0.0
        %vm729 = vcmp.gt.f32.partialorder %v697, 0.0
        %vm730 = vcmp.gt.f32.partialorder %v698, 0.0
        %vm731 = vcmp.gt.f32.partialorder %v699, 0.0
        %vm732 = vcmp.gt.f32.partialorder %v700, 0.0
        %vm733 = vcmp.gt.f32.partialorder %v701, 0.0
        %vm734 = vcmp.gt.f32.partialorder %v702, 0.0
        %vm735 = vcmp.gt.f32.partialorder %v703, 0.0
        %vm736 = vcmp.gt.f32.partialorder %v704, 0.0
        %vm737 = vcmp.gt.f32.partialorder %v705, 0.0
        %vm738 = vcmp.gt.f32.partialorder %v706, 0.0
        %vm739 = vcmp.gt.f32.partialorder %v707, 0.0
        %vm740 = vcmp.gt.f32.partialorder %v708, 0.0
        %vm741 = vcmp.gt.f32.partialorder %v709, 0.0
        %vm742 = vcmp.gt.f32.partialorder %v710, 0.0
        %vm743 = vcmp.gt.f32.partialorder %v711, 0.0
        %vm744 = vcmp.gt.f32.partialorder %v712, 0.0
        %vm745 = vcmp.gt.f32.partialorder %v713, 0.0
        %vm746 = vcmp.gt.f32.partialorder %v714, 0.0
        %vm747 = vcmp.gt.f32.partialorder %v715, 0.0
        %vm748 = vcmp.gt.f32.partialorder %v716, 0.0
        %vm749 = vcmp.gt.f32.partialorder %v717, 0.0
        %vm750 = vcmp.gt.f32.partialorder %v718, 0.0
        %vm751 = vcmp.gt.f32.partialorder %v719, 0.0
        %vm752 = vcmp.gt.f32.partialorder %v720, 0.0
        %vm753 = vcmp.gt.f32.partialorder %v721, 0.0
        %vm754 = vcmp.gt.f32.partialorder %v722, 0.0
        %vm755 = vcmp.gt.f32.partialorder %v723, 0.0
        %vm756 = vcmp.gt.f32.partialorder %v724, 0.0
        %vm757 = vcmp.gt.f32.partialorder %v725, 0.0
        %vm758 = vcmp.gt.f32.partialorder %v726, 0.0
        %vm759 = vcmp.gt.f32.partialorder %v727, 0.0
        %v760 = vmul.f32 %v696, 0.1
        %v761 = vmul.f32 %v697, 0.1
        %v762 = vmul.f32 %v698, 0.1
        %v763 = vmul.f32 %v699, 0.1
        %v764 = vmul.f32 %v700, 0.1
        %v765 = vmul.f32 %v701, 0.1
        %v766 = vmul.f32 %v702, 0.1
        %v767 = vmul.f32 %v703, 0.1
        %v768 = vmul.f32 %v704, 0.1
        %v769 = vmul.f32 %v705, 0.1
        %v770 = vmul.f32 %v706, 0.1
        %v771 = vmul.f32 %v707, 0.1
        %v772 = vmul.f32 %v708, 0.1
        %v773 = vmul.f32 %v709, 0.1
        %v774 = vmul.f32 %v710, 0.1
        %v775 = vmul.f32 %v711, 0.1
        %v776 = vmul.f32 %v712, 0.1
        %v777 = vmul.f32 %v713, 0.1
        %v778 = vmul.f32 %v714, 0.1
        %v779 = vmul.f32 %v715, 0.1
        %v780 = vmul.f32 %v716, 0.1
        %v781 = vmul.f32 %v717, 0.1
        %v782 = vmul.f32 %v718, 0.1
        %v783 = vmul.f32 %v719, 0.1
        %v784 = vmul.f32 %v720, 0.1
        %v785 = vmul.f32 %v721, 0.1
        %v786 = vmul.f32 %v722, 0.1
        %v787 = vmul.f32 %v723, 0.1
        %v788 = vmul.f32 %v724, 0.1
        %v789 = vmul.f32 %v725, 0.1
        %v790 = vmul.f32 %v726, 0.1
        %v791 = vmul.f32 %v727, 0.1
        %v792 = vsel %vm728, %v696, %v760
        %v793 = vsel %vm729, %v697, %v761
        %v794 = vsel %vm730, %v698, %v762
        %v795 = vsel %vm731, %v699, %v763
        %v796 = vsel %vm732, %v700, %v764
        %v797 = vsel %vm733, %v701, %v765
        %v798 = vsel %vm734, %v702, %v766
        %v799 = vsel %vm735, %v703, %v767
        %v800 = vsel %vm736, %v704, %v768
        %v801 = vsel %vm737, %v705, %v769
        %v802 = vsel %vm738, %v706, %v770
        %v803 = vsel %vm739, %v707, %v771
        %v804 = vsel %vm740, %v708, %v772
        %v805 = vsel %vm741, %v709, %v773
        %v806 = vsel %vm742, %v710, %v774
        %v807 = vsel %vm743, %v711, %v775
        %v808 = vsel %vm744, %v712, %v776
        %v809 = vsel %vm745, %v713, %v777
        %v810 = vsel %vm746, %v714, %v778
        %v811 = vsel %vm747, %v715, %v779
        %v812 = vsel %vm748, %v716, %v780
        %v813 = vsel %vm749, %v717, %v781
        %v814 = vsel %vm750, %v718, %v782
        %v815 = vsel %vm751, %v719, %v783
        %v816 = vsel %vm752, %v720, %v784
        %v817 = vsel %vm753, %v721, %v785
        %v818 = vsel %vm754, %v722, %v786
        %v819 = vsel %vm755, %v723, %v787
        %v820 = vsel %vm756, %v724, %v788
        %v821 = vsel %vm757, %v725, %v789
        %v822 = vsel %vm758, %v726, %v790
        %v823 = vsel %vm759, %v727, %v791
        %824 = vst [vmem:[%s287] sm:$0xff] %v792
        %825 = vst [vmem:[%s287 + $0x8] sm:$0xff] %v793
        %826 = vst [vmem:[%s287 + $0x10] sm:$0xff] %v794
        %827 = vst [vmem:[%s287 + $0x18] sm:$0xff] %v795
        %828 = vst [vmem:[%s287 + $0x20] sm:$0xff] %v796
        %829 = vst [vmem:[%s287 + $0x28] sm:$0xff] %v797
        %830 = vst [vmem:[%s287 + $0x30] sm:$0xff] %v798
        %831 = vst [vmem:[%s287 + $0x38] sm:$0xff] %v799
        %832 = vst [vmem:[%s287 + $0x40] sm:$0xff] %v800
        %833 = vst [vmem:[%s287 + $0x48] sm:$0xff] %v801
        %834 = vst [vmem:[%s287 + $0x50] sm:$0xff] %v802
        %835 = vst [vmem:[%s287 + $0x58] sm:$0xff] %v803
        %836 = vst [vmem:[%s287 + $0x60] sm:$0xff] %v804
        %837 = vst [vmem:[%s287 + $0x68] sm:$0xff] %v805
        %838 = vst [vmem:[%s287 + $0x70] sm:$0xff] %v806
        %839 = vst [vmem:[%s287 + $0x78] sm:$0xff] %v807
        %840 = vst [vmem:[%s287 + $0x80] sm:$0xff] %v808
        %841 = vst [vmem:[%s287 + $0x88] sm:$0xff] %v809
        %842 = vst [vmem:[%s287 + $0x90] sm:$0xff] %v810
        %843 = vst [vmem:[%s287 + $0x98] sm:$0xff] %v811
        %844 = vst [vmem:[%s287 + $0xa0] sm:$0xff] %v812
        %845 = vst [vmem:[%s287 + $0xa8] sm:$0xff] %v813
        %846 = vst [vmem:[%s287 + $0xb0] sm:$0xff] %v814
        %847 = vst [vmem:[%s287 + $0xb8] sm:$0xff] %v815
        %848 = vst [vmem:[%s287 + $0xc0] sm:$0xff] %v816
        %849 = vst [vmem:[%s287 + $0xc8] sm:$0xff] %v817
        %850 = vst [vmem:[%s287 + $0xd0] sm:$0xff] %v818
        %851 = vst [vmem:[%s287 + $0xd8] sm:$0xff] %v819
        %852 = vst [vmem:[%s287 + $0xe0] sm:$0xff] %v820
        %853 = vst [vmem:[%s287 + $0xe8] sm:$0xff] %v821
        %854 = vst [vmem:[%s287 + $0xf0] sm:$0xff] %v822
        %855 = vst [vmem:[%s287 + $0xf8] sm:$0xff] %v823
        %s856 = sand.u32 %s159, 1
        %s857 = scalar_lea.sflag [#allocation4], %s856
        %s858 = sand.u32 %s159, 1
        %s859 = smul.addr %s858, 256
        %s860 = scalar_lea.vmem [#allocation7], %s859
        // Predicated region
        $region45: #{tpu_custom_call.1} parent=35 // pred_check
          %p861 = pneg %p169
        $region46: #{tpu_custom_call.1} parent=35 // pred_check_branch
          %863 = sbr.rel (%p861) target = $region48
        $region47: #{tpu_custom_call.1} parent=35 // pred_region
          %s864 = smul.u32 16, %s28
          %s866 = ssub.s32 4096, 4096
          %867 = vsyncadd %s857, %s866
          %s868 = smul.addr %s864, 2
          %s869 = sadd.s32 %s29, %s868
          %s870 = smul.addr %s27, 32
          %s871 = sadd.s32 %s869, %s870
          %s872 = smul.addr %s871, 128
          %s873 = scalar_lea.hbm %s4, %s872
          %s874 = sshll.u32 %s860, 4
          %s875 = int_to_ptr.vmem [resolvable:$true] %s874
          %880 = dma.vmem_to_hbm [thread:$0]  %s875, 4096, %s873, %s857, 128, 128, 8
        $region48: #{tpu_custom_call.1} parent=35 // pred_fallthru
          _
      $region36: #{tpu_custom_call.1} parent=5 // pred_fallthru
        _
      %p881 = scmp.le.s32.totalorder 2, %s17
      // Predicated region
      $region49: #{tpu_custom_call.1} parent=5 // pred_check
        %p882 = pneg %p881
      $region50: #{tpu_custom_call.1} parent=5 // pred_check_branch
        %884 = sbr.rel (%p882) target = $region52
      $region51: #{tpu_custom_call.1} parent=5 // pred_region
        %s885 = ssub.s32 %s17, 2
        // Predicated region
        $region53: #{tpu_custom_call.1} parent=51 // pred_check
          %p886 = pneg %p175
        $region54: #{tpu_custom_call.1} parent=51 // pred_check_branch
          %888 = sbr.rel (%p886) target = $region56
        $region55: #{tpu_custom_call.1} parent=51 // pred_region
          %s889 = sand.u32 %s160, 1
          %s890 = scalar_lea.sflag [#allocation4], %s889
          %s891 = sand.u32 %s160, 1
          %s892 = smul.addr %s891, 256
          %s893 = scalar_lea.vmem [#allocation7], %s892
          %894 = dma.done %s890, 4096
        $region56: #{tpu_custom_call.1} parent=51 // pred_fallthru
          _
      $region52: #{tpu_custom_call.1} parent=5 // pred_fallthru
        _
    $region6: #{tpu_custom_call.1} parent=1 // loop_footer
      %s21 = sadd.s32 1, %s17
    $region7: #{tpu_custom_call.1} parent=1 // loop_footer_branch
      %16 = sbr.rel target = $region3
    $region8: #{tpu_custom_call.1} parent=1 // loop_exit
      _
    %895 = vsyncpa [#allocation3], 1
    %s896 = scalar_lea.sflag [#allocation3], 1
    %897 = vsyncpa %s896, 1
    %898 = vsyncpa [#allocation6], 1
    %899 = vsyncpa [#allocation4], 1
    %s900 = scalar_lea.sflag [#allocation4], 1
    %901 = vsyncpa %s900, 1

</llo_original>
